<compile_context>
chip_gen: v7x
topology: tpu7x:2x2x1
jax: 0.10.0
libtpu: 0.0.40
codegen_flags: <defaults>
</compile_context>

<pallas_src>
import functools

import jax
import jax.numpy as jnp
from jax.experimental import pallas as pl
from jax.experimental.pallas import tpu as pltpu


def _test_loss_kernel(w_ref, c_ref, out_ref, *, commission_ratio, interest_rate):
    """Per-batch-tile hot path.

    w_ref : [T, Ap, Bt]  portfolio weights (cash + assets), batch on lanes.
    c_ref : [T, A,  Bt]  close-price relatives (assets only; cash price == 1).
    out_ref: [1, Bt]     log(portfolio value) per batch element (lane-dense).
    """
    w = w_ref[...].astype(jnp.float32)           # upcast after DMA (bf16-safe)
    c = c_ref[...].astype(jnp.float32)
    T, Ap, Bt = w.shape

    w_cash = w[:, 0:1, :]                        # [T, 1, Bt]
    w_assets = w[:, 1:, :]                       # [T, A, Bt]

    # element_reward (cash column is w_cash * 1, handled analytically)
    er_assets = w_assets * c                                            # [T, A, Bt]
    reward = w_cash + jnp.sum(er_assets, axis=1, keepdims=True)         # [T, 1, Bt]

    # interest: only negative element rewards contribute (incl. cash term)
    interest = (jnp.minimum(w_cash, 0.0)
                + jnp.sum(jnp.minimum(er_assets, 0.0), axis=1, keepdims=True)
                ) * interest_rate                                       # [T, 1, Bt]

    # future_omega = element_reward / reward  (reciprocal -> EUP slot, ~free)
    inv_r = pl.reciprocal(reward, approx=True)
    fo_cash = w_cash * inv_r                                            # [T, 1, Bt]
    fo_assets = er_assets * inv_r                                       # [T, A, Bt]

    # commission: d[t] = || future_omega[t-1] - w[t] ||_1  for t >= 1
    d_tail = (jnp.abs(fo_cash[:-1] - w_cash[1:])
              + jnp.sum(jnp.abs(fo_assets[:-1] - w_assets[1:]),
                        axis=1, keepdims=True))                         # [T-1, 1, Bt]
    pure_pc = jnp.concatenate(
        [jnp.ones((1, 1, Bt), jnp.float32),
         1.0 - d_tail * commission_ratio],
        axis=0)                                                         # [T, 1, Bt]

    reward = reward * pure_pc + interest                                # [T, 1, Bt]

    # log portfolio value = sum_t log(reward_t)  (avoids prod under/overflow)
    out_ref[...] = jnp.sum(jnp.log(reward), axis=0)                     # [1, Bt]


def test_loss_forward(w, y, commission_ratio, interest_rate, *, batch_tile=128):
    """Equivalent of Test_Loss(commission_ratio, interest_rate).forward(w, y)
    with size_average=True. Returns (loss, portfolio_value.mean())."""
    B, T, _, Ap = w.shape
    A = Ap - 1

    # Batch-on-lanes layout: [T, Ap, B] and [T, A, B]. Only the close prices
    # are materialized (no concat-of-ones / astype pass over [B,T,Ap]).
    w_t = jnp.transpose(w[:, :, 0, :], (1, 2, 0))        # [T, Ap, B]
    c_t = jnp.transpose(y[:, :, :, 0], (1, 2, 0))        # [T, A,  B]

    if B <= batch_tile:
        bt, Bp = B, B                    # single full-dim block (no 128 rule)
    else:
        bt = batch_tile                  # multiple of 128 -> lane-aligned
        Bp = pl.cdiv(B, bt) * bt
        if Bp != B:
            pad = ((0, 0), (0, 0), (0, Bp - B))
            w_t = jnp.pad(w_t, pad, mode="edge")   # replicate valid columns
            c_t = jnp.pad(c_t, pad, mode="edge")

    kernel = functools.partial(
        _test_loss_kernel,
        commission_ratio=float(commission_ratio),
        interest_rate=float(interest_rate),
    )

    log_pv = pl.pallas_call(
        kernel,
        out_shape=jax.ShapeDtypeStruct((1, Bp), jnp.float32),
        grid=(Bp // bt,),
        in_specs=[
            pl.BlockSpec((T, Ap, bt), lambda i: (0, 0, i)),
            pl.BlockSpec((T, A, bt), lambda i: (0, 0, i)),
        ],
        out_specs=pl.BlockSpec((1, bt), lambda i: (0, i)),
        compiler_params=pltpu.CompilerParams(
            dimension_semantics=("parallel",)),
    )(w_t, c_t)                                          # [1, Bp]

    log_pv = log_pv[0, :B]                               # [B]
    pv = jnp.exp(log_pv)
    loss = -jnp.mean(log_pv)                             # == mean(-log(pv))
    return loss, jnp.mean(pv)


def _reference_forward(w, y, commission_ratio, interest_rate):
    """Pure-JAX transcription of the PyTorch forward (size_average=True)."""
    B, T = w.shape[0], w.shape[1]
    close = y[:, :, :, 0:1]                                       # [B,T,A,1]
    cp = jnp.concatenate([jnp.ones((B, T, 1, 1), y.dtype), close], axis=2)
    reward = jnp.matmul(w, cp)                                    # [B,T,1,1]
    cp2 = cp.reshape(B, T, 1, cp.shape[2])                        # [B,T,1,Ap]
    er = w * cp2
    interest = jnp.sum(jnp.where(er < 0, er, 0.0), axis=3, keepdims=True) * interest_rate
    fo = er / reward
    wt, wt1 = fo[:, :-1], w[:, 1:]
    d = jnp.sum(jnp.abs(wt - wt1), axis=-1)                       # [B,T-1,1]
    pure_pc = 1.0 - d * commission_ratio
    pure_pc = jnp.concatenate([jnp.ones((B, 1, 1), w.dtype), pure_pc], axis=1)
    pure_pc = pure_pc.reshape(B, T, 1, 1)
    reward = reward * pure_pc + interest
    pv = jnp.prod(reward, axis=1)                                 # [B,1,1]
    loss = jnp.mean(-jnp.log(pv))
    return loss, jnp.mean(pv)


if __name__ == "__main__":
    commission_ratio = 0.0025
    interest_rate = 0.02 / 250.0

    key = jax.random.PRNGKey(0)

    # --- small shapes matching the module: batch=2, time=8, assets=3, feat=4
    B, T, A, F = 2, 8, 3, 4
    kw, ky, kw2, ky2 = jax.random.split(key, 4)
    w = jax.nn.softmax(jax.random.normal(kw, (B, T, 1, A + 1), jnp.float32), axis=-1)
    y = 1.0 + 0.05 * jax.random.normal(ky, (B, T, A, F), jnp.float32)

    loss, pv_mean = test_loss_forward(w, y, commission_ratio, interest_rate)
    jax.block_until_ready((loss, pv_mean))
    ref_loss, ref_pv = _reference_forward(w, y, commission_ratio, interest_rate)
    assert jnp.allclose(loss, ref_loss, rtol=2e-4, atol=2e-5), (loss, ref_loss)
    assert jnp.allclose(pv_mean, ref_pv, rtol=2e-4, atol=2e-5), (pv_mean, ref_pv)

    # --- larger batch: exercises the lane-tiled multi-block path (grid > 1)
    B2 = 300
    w2 = jax.nn.softmax(jax.random.normal(kw2, (B2, T, 1, A + 1), jnp.float32), axis=-1)
    y2 = 1.0 + 0.05 * jax.random.normal(ky2, (B2, T, A, F), jnp.float32)
    loss2, pv2 = test_loss_forward(w2, y2, commission_ratio, interest_rate)
    jax.block_until_ready((loss2, pv2))
    ref_loss2, ref_pv2 = _reference_forward(w2, y2, commission_ratio, interest_rate)
    assert jnp.allclose(loss2, ref_loss2, rtol=2e-4, atol=2e-5), (loss2, ref_loss2)
    assert jnp.allclose(pv2, ref_pv2, rtol=2e-4, atol=2e-5), (pv2, ref_pv2)

    # TODO(synk): the size_average=False branch (SR/CR/MDD/St_v path) relies on
    # a data-dependent Python loop (max_drawdown, .item()) and is not kernelized.
    print("KERNEL_OK")
</pallas_src>

<mosaic_0001>
module attributes {stable_mosaic.version = 11 : i64} {
  func.func @_test_loss_kernel(%arg0: i32, %arg1: memref<8x4x2xf32, #tpu.memory_space<vmem>>, %arg2: memref<8x3x2xf32, #tpu.memory_space<vmem>>, %arg3: memref<1x2xf32, #tpu.memory_space<vmem>>) attributes {dimension_semantics = [#tpu.dimension_semantics<parallel>], iteration_bounds = array<i64: 1>, scalar_prefetch = 0 : i64, scratch_operands = 0 : i64, tpu.core_type = #tpu.core_type<tc>, window_params = [{transform_indices = @transform_0, window_bounds = array<i64: 8, 4, 2>}, {transform_indices = @transform_1, window_bounds = array<i64: 8, 3, 2>}, {transform_indices = @transform_2, window_bounds = array<i64: 1, 2>}]} {
    %c0 = arith.constant 0 : index
    %c0_0 = arith.constant 0 : index
    %c0_1 = arith.constant 0 : index
    %0 = vector.load %arg1[%c0, %c0_0, %c0_1] : memref<8x4x2xf32, #tpu.memory_space<vmem>>, vector<8x4x2xf32>
    %c0_2 = arith.constant 0 : index
    %c0_3 = arith.constant 0 : index
    %c0_4 = arith.constant 0 : index
    %1 = vector.load %arg2[%c0_2, %c0_3, %c0_4] : memref<8x3x2xf32, #tpu.memory_space<vmem>>, vector<8x3x2xf32>
    %2 = vector.extract_strided_slice %0 {offsets = [0, 0, 0], sizes = [8, 1, 2], strides = [1, 1, 1]} : vector<8x4x2xf32> to vector<8x1x2xf32>
    %3 = vector.extract_strided_slice %0 {offsets = [0, 1, 0], sizes = [8, 3, 2], strides = [1, 1, 1]} : vector<8x4x2xf32> to vector<8x3x2xf32>
    %4 = arith.mulf %3, %1 : vector<8x3x2xf32>
    %cst = arith.constant dense<0.000000e+00> : vector<8x2xf32>
    %5 = vector.multi_reduction <add>, %4, %cst [1] : vector<8x3x2xf32> to vector<8x2xf32>
    %6 = vector.shape_cast %5 : vector<8x2xf32> to vector<8x1x2xf32>
    %7 = arith.addf %2, %6 : vector<8x1x2xf32>
    %cst_5 = arith.constant 0.000000e+00 : f32
    %8 = vector.broadcast %cst_5 : f32 to vector<8x1x2xf32>
    %9 = arith.minimumf %2, %8 : vector<8x1x2xf32>
    %cst_6 = arith.constant 0.000000e+00 : f32
    %10 = vector.broadcast %cst_6 : f32 to vector<8x3x2xf32>
    %11 = arith.minimumf %4, %10 : vector<8x3x2xf32>
    %cst_7 = arith.constant dense<0.000000e+00> : vector<8x2xf32>
    %12 = vector.multi_reduction <add>, %11, %cst_7 [1] : vector<8x3x2xf32> to vector<8x2xf32>
    %13 = vector.shape_cast %12 : vector<8x2xf32> to vector<8x1x2xf32>
    %14 = arith.addf %9, %13 : vector<8x1x2xf32>
    %cst_8 = arith.constant 8.000000e-05 : f32
    %15 = vector.broadcast %cst_8 : f32 to vector<8x1x2xf32>
    %16 = arith.mulf %14, %15 : vector<8x1x2xf32>
    %17 = tpu.reciprocal %7 {approx = true} : vector<8x1x2xf32> -> vector<8x1x2xf32>
    %18 = arith.mulf %2, %17 : vector<8x1x2xf32>
    %19 = vector.broadcast %17 : vector<8x1x2xf32> to vector<8x3x2xf32>
    %20 = arith.mulf %4, %19 : vector<8x3x2xf32>
    %21 = vector.extract_strided_slice %18 {offsets = [0, 0, 0], sizes = [7, 1, 2], strides = [1, 1, 1]} : vector<8x1x2xf32> to vector<7x1x2xf32>
    %22 = vector.extract_strided_slice %2 {offsets = [1, 0, 0], sizes = [7, 1, 2], strides = [1, 1, 1]} : vector<8x1x2xf32> to vector<7x1x2xf32>
    %23 = arith.subf %21, %22 : vector<7x1x2xf32>
    %24 = math.absf %23 : vector<7x1x2xf32>
    %25 = vector.extract_strided_slice %20 {offsets = [0, 0, 0], sizes = [7, 3, 2], strides = [1, 1, 1]} : vector<8x3x2xf32> to vector<7x3x2xf32>
    %26 = vector.extract_strided_slice %3 {offsets = [1, 0, 0], sizes = [7, 3, 2], strides = [1, 1, 1]} : vector<8x3x2xf32> to vector<7x3x2xf32>
    %27 = arith.subf %25, %26 : vector<7x3x2xf32>
    %28 = math.absf %27 : vector<7x3x2xf32>
    %cst_9 = arith.constant dense<0.000000e+00> : vector<7x2xf32>
    %29 = vector.multi_reduction <add>, %28, %cst_9 [1] : vector<7x3x2xf32> to vector<7x2xf32>
    %30 = vector.shape_cast %29 : vector<7x2xf32> to vector<7x1x2xf32>
    %31 = arith.addf %24, %30 : vector<7x1x2xf32>
    %cst_10 = arith.constant 1.000000e+00 : f32
    %32 = vector.broadcast %cst_10 : f32 to vector<1x1x2xf32>
    %cst_11 = arith.constant 2.500000e-03 : f32
    %33 = vector.broadcast %cst_11 : f32 to vector<7x1x2xf32>
    %34 = arith.mulf %31, %33 : vector<7x1x2xf32>
    %cst_12 = arith.constant 1.000000e+00 : f32
    %35 = vector.broadcast %cst_12 : f32 to vector<7x1x2xf32>
    %36 = arith.subf %35, %34 : vector<7x1x2xf32>
    %37 = tpu.concatenate %32, %36 in 0 : vector<1x1x2xf32>, vector<7x1x2xf32> -> vector<8x1x2xf32>
    %38 = arith.mulf %7, %37 : vector<8x1x2xf32>
    %39 = arith.addf %38, %16 : vector<8x1x2xf32>
    %40 = math.log %39 : vector<8x1x2xf32>
    %cst_13 = arith.constant dense<0.000000e+00> : vector<1x2xf32>
    %41 = vector.multi_reduction <add>, %40, %cst_13 [0] : vector<8x1x2xf32> to vector<1x2xf32>
    %c0_14 = arith.constant 0 : index
    %c0_15 = arith.constant 0 : index
    %42 = vector.load %arg3[%c0_14, %c0_15] : memref<1x2xf32, #tpu.memory_space<vmem>>, vector<1x2xf32>
    tpu.vector_store %arg3[%c0_14, %c0_15], %41 {strides = array<i32>} : memref<1x2xf32, #tpu.memory_space<vmem>>, vector<1x2xf32>,
    return
  }
  func.func @transform_0(%arg0: i32) -> (i32, i32, i32) {
    %c0_i32 = arith.constant 0 : i32
    %c0_i32_0 = arith.constant 0 : i32
    %c0_i32_1 = arith.constant 0 : i32
    return %c0_i32, %c0_i32_0, %arg0 : i32, i32, i32
  }
  func.func @transform_1(%arg0: i32) -> (i32, i32, i32) {
    %c0_i32 = arith.constant 0 : i32
    %c0_i32_0 = arith.constant 0 : i32
    %c0_i32_1 = arith.constant 0 : i32
    return %c0_i32, %c0_i32_0, %arg0 : i32, i32, i32
  }
  func.func @transform_2(%arg0: i32) -> (i32, i32) {
    %c0_i32 = arith.constant 0 : i32
    %c0_i32_0 = arith.constant 0 : i32
    return %c0_i32, %arg0 : i32, i32
  }
}

</mosaic_0001>

<llo_original>
// kernel: tpu_custom_call.1
$region0: #{tpu_custom_call.1}
  #allocation0 [shape = 'u32[]', space=smem, size = 0x4, offset = 0x4, fixed_abs, tag = 'smem constant byte address 0x4 - core index']
  #allocation1 [shape = 'u32[144,128]{1,0:T(1,128)}', space=vmem, size = 0x12000, scoped, tag = 'internal scratch']
  %s0 = inlined_call_operand.vmem [shape: f32[8,4,2], index: 0, kind: input, shape index: {}]
  %s1 = inlined_call_operand.vmem [shape: f32[8,3,2], index: 1, kind: input, shape index: {}]
  %s2 = inlined_call_operand.hbm [shape: f32[1,2], index: 2, kind: output, shape index: {}]
  %s3 = sld [smem:[#allocation0]]
  $region18: #{tpu_custom_call.1} parent=0
    _
  %s5 = ssub.s32 1, %s3
  %s6 = scalar_select 0, %s5, %s3
  $region1: #{tpu_custom_call.1} parent=0
    #allocation2 [shape = 'u8[512]{0}', space=vmem, size = 0x400, scoped, tag = 'output window, operand 0, single buffered']
    #allocation3 [shape = 's32[1]{0}', space=sflag, size = 0x4, scoped, tag = 'scoped memory for tpu_custom_call.1']
    %7 = vsyncpa [#allocation3], 0
    // Predicated region
    $region2: #{tpu_custom_call.1} parent=1 // pred_check
      _
    $region3: #{tpu_custom_call.1} parent=1 // pred_check_branch
      %9 = sbr.rel (0) target = $region5
    $region4: #{tpu_custom_call.1} parent=1 // pred_region
      _
    $region5: #{tpu_custom_call.1} parent=1 // pred_fallthru
      _
    // Predicated region
    $region6: #{tpu_custom_call.1} parent=1 // pred_check
      _
    $region7: #{tpu_custom_call.1} parent=1 // pred_check_branch
      %11 = sbr.rel (0) target = $region9
    $region8: #{tpu_custom_call.1} parent=1 // pred_region
      _
    $region9: #{tpu_custom_call.1} parent=1 // pred_fallthru
      _
    %v12 = vld [vmem:[%s0] sm:$0xf]
    %v13 = vld [vmem:[%s0 + $0x4] sm:$0xf]
    %v14 = vld [vmem:[%s0 + $0x8] sm:$0xf]
    %v15 = vld [vmem:[%s0 + $0xc] sm:$0xf]
    %v16 = vld [vmem:[%s0 + $0x10] sm:$0xf]
    %v17 = vld [vmem:[%s0 + $0x14] sm:$0xf]
    %v18 = vld [vmem:[%s0 + $0x18] sm:$0xf]
    %v19 = vld [vmem:[%s0 + $0x1c] sm:$0xf]
    %v20 = vld [vmem:[%s1] sm:$0x7]
    %v21 = vld [vmem:[%s1 + $0x4] sm:$0x7]
    %v22 = vld [vmem:[%s1 + $0x8] sm:$0x7]
    %v23 = vld [vmem:[%s1 + $0xc] sm:$0x7]
    %v24 = vld [vmem:[%s1 + $0x10] sm:$0x7]
    %v25 = vld [vmem:[%s1 + $0x14] sm:$0x7]
    %v26 = vld [vmem:[%s1 + $0x18] sm:$0x7]
    %v27 = vld [vmem:[%s1 + $0x1c] sm:$0x7]
    %v36 = vrot.slane %v20, 7
    %v37 = vrot.slane %v21, 7
    %v38 = vrot.slane %v22, 7
    %v39 = vrot.slane %v23, 7
    %v40 = vrot.slane %v24, 7
    %v41 = vrot.slane %v25, 7
    %v42 = vrot.slane %v26, 7
    %v43 = vrot.slane %v27, 7
    %v52 = vmul.f32 %v12, %v36
    %v53 = vmul.f32 %v13, %v37
    %v54 = vmul.f32 %v14, %v38
    %v55 = vmul.f32 %v15, %v39
    %v56 = vmul.f32 %v16, %v40
    %v57 = vmul.f32 %v17, %v41
    %v58 = vmul.f32 %v18, %v42
    %v59 = vmul.f32 %v19, %v43
    %v68 = vrot.slane %v52, 1
    %v69 = vrot.slane %v53, 1
    %v70 = vrot.slane %v54, 1
    %v71 = vrot.slane %v55, 1
    %v72 = vrot.slane %v56, 1
    %v73 = vrot.slane %v57, 1
    %v74 = vrot.slane %v58, 1
    %v75 = vrot.slane %v59, 1
    %vm84 = vcmask 10240
    %v85 = vsel %vm84, %v68, 0.0
    %v86 = vrot.slane %v85, 4
    %v87 = vadd.f32 %v85, %v86
    %v88 = vrot.slane %v87, 2
    %v89 = vadd.f32 %v87, %v88
    %v90 = vrot.slane %v89, 1
    %v91 = vadd.f32 %v89, %v90
    %v92 = vsel %vm84, %v69, 0.0
    %v93 = vrot.slane %v92, 4
    %v94 = vadd.f32 %v92, %v93
    %v95 = vrot.slane %v94, 2
    %v96 = vadd.f32 %v94, %v95
    %v97 = vrot.slane %v96, 1
    %v98 = vadd.f32 %v96, %v97
    %v99 = vsel %vm84, %v70, 0.0
    %v100 = vrot.slane %v99, 4
    %v101 = vadd.f32 %v99, %v100
    %v102 = vrot.slane %v101, 2
    %v103 = vadd.f32 %v101, %v102
    %v104 = vrot.slane %v103, 1
    %v105 = vadd.f32 %v103, %v104
    %v106 = vsel %vm84, %v71, 0.0
    %v107 = vrot.slane %v106, 4
    %v108 = vadd.f32 %v106, %v107
    %v109 = vrot.slane %v108, 2
    %v110 = vadd.f32 %v108, %v109
    %v111 = vrot.slane %v110, 1
    %v112 = vadd.f32 %v110, %v111
    %v113 = vsel %vm84, %v72, 0.0
    %v114 = vrot.slane %v113, 4
    %v115 = vadd.f32 %v113, %v114
    %v116 = vrot.slane %v115, 2
    %v117 = vadd.f32 %v115, %v116
    %v118 = vrot.slane %v117, 1
    %v119 = vadd.f32 %v117, %v118
    %v120 = vsel %vm84, %v73, 0.0
    %v121 = vrot.slane %v120, 4
    %v122 = vadd.f32 %v120, %v121
    %v123 = vrot.slane %v122, 2
    %v124 = vadd.f32 %v122, %v123
    %v125 = vrot.slane %v124, 1
    %v126 = vadd.f32 %v124, %v125
    %v127 = vsel %vm84, %v74, 0.0
    %v128 = vrot.slane %v127, 4
    %v129 = vadd.f32 %v127, %v128
    %v130 = vrot.slane %v129, 2
    %v131 = vadd.f32 %v129, %v130
    %v132 = vrot.slane %v131, 1
    %v133 = vadd.f32 %v131, %v132
    %v134 = vsel %vm84, %v75, 0.0
    %v135 = vrot.slane %v134, 4
    %v136 = vadd.f32 %v134, %v135
    %v137 = vrot.slane %v136, 2
    %v138 = vadd.f32 %v136, %v137
    %v139 = vrot.slane %v138, 1
    %v140 = vadd.f32 %v138, %v139
    %v141 = vadd.f32 %v12, %v91
    %v142 = vadd.f32 %v13, %v98
    %v143 = vadd.f32 %v14, %v105
    %v144 = vadd.f32 %v15, %v112
    %v145 = vadd.f32 %v16, %v119
    %v146 = vadd.f32 %v17, %v126
    %v147 = vadd.f32 %v18, %v133
    %v148 = vadd.f32 %v19, %v140
    %v149 = vmin.f32 %v12, 0.0
    %v150 = vmin.f32 %v13, 0.0
    %v151 = vmin.f32 %v14, 0.0
    %v152 = vmin.f32 %v15, 0.0
    %v153 = vmin.f32 %v16, 0.0
    %v154 = vmin.f32 %v17, 0.0
    %v155 = vmin.f32 %v18, 0.0
    %v156 = vmin.f32 %v19, 0.0
    %v157 = vmin.f32 %v52, 0.0
    %v158 = vmin.f32 %v53, 0.0
    %v159 = vmin.f32 %v54, 0.0
    %v160 = vmin.f32 %v55, 0.0
    %v161 = vmin.f32 %v56, 0.0
    %v162 = vmin.f32 %v57, 0.0
    %v163 = vmin.f32 %v58, 0.0
    %v164 = vmin.f32 %v59, 0.0
    %v173 = vrot.slane %v157, 1
    %v174 = vrot.slane %v158, 1
    %v175 = vrot.slane %v159, 1
    %v176 = vrot.slane %v160, 1
    %v177 = vrot.slane %v161, 1
    %v178 = vrot.slane %v162, 1
    %v179 = vrot.slane %v163, 1
    %v180 = vrot.slane %v164, 1
    %v189 = vsel %vm84, %v173, 0.0
    %v190 = vrot.slane %v189, 4
    %v191 = vadd.f32 %v189, %v190
    %v192 = vrot.slane %v191, 2
    %v193 = vadd.f32 %v191, %v192
    %v194 = vrot.slane %v193, 1
    %v195 = vadd.f32 %v193, %v194
    %v196 = vsel %vm84, %v174, 0.0
    %v197 = vrot.slane %v196, 4
    %v198 = vadd.f32 %v196, %v197
    %v199 = vrot.slane %v198, 2
    %v200 = vadd.f32 %v198, %v199
    %v201 = vrot.slane %v200, 1
    %v202 = vadd.f32 %v200, %v201
    %v203 = vsel %vm84, %v175, 0.0
    %v204 = vrot.slane %v203, 4
    %v205 = vadd.f32 %v203, %v204
    %v206 = vrot.slane %v205, 2
    %v207 = vadd.f32 %v205, %v206
    %v208 = vrot.slane %v207, 1
    %v209 = vadd.f32 %v207, %v208
    %v210 = vsel %vm84, %v176, 0.0
    %v211 = vrot.slane %v210, 4
    %v212 = vadd.f32 %v210, %v211
    %v213 = vrot.slane %v212, 2
    %v214 = vadd.f32 %v212, %v213
    %v215 = vrot.slane %v214, 1
    %v216 = vadd.f32 %v214, %v215
    %v217 = vsel %vm84, %v177, 0.0
    %v218 = vrot.slane %v217, 4
    %v219 = vadd.f32 %v217, %v218
    %v220 = vrot.slane %v219, 2
    %v221 = vadd.f32 %v219, %v220
    %v222 = vrot.slane %v221, 1
    %v223 = vadd.f32 %v221, %v222
    %v224 = vsel %vm84, %v178, 0.0
    %v225 = vrot.slane %v224, 4
    %v226 = vadd.f32 %v224, %v225
    %v227 = vrot.slane %v226, 2
    %v228 = vadd.f32 %v226, %v227
    %v229 = vrot.slane %v228, 1
    %v230 = vadd.f32 %v228, %v229
    %v231 = vsel %vm84, %v179, 0.0
    %v232 = vrot.slane %v231, 4
    %v233 = vadd.f32 %v231, %v232
    %v234 = vrot.slane %v233, 2
    %v235 = vadd.f32 %v233, %v234
    %v236 = vrot.slane %v235, 1
    %v237 = vadd.f32 %v235, %v236
    %v238 = vsel %vm84, %v180, 0.0
    %v239 = vrot.slane %v238, 4
    %v240 = vadd.f32 %v238, %v239
    %v241 = vrot.slane %v240, 2
    %v242 = vadd.f32 %v240, %v241
    %v243 = vrot.slane %v242, 1
    %v244 = vadd.f32 %v242, %v243
    %v245 = vadd.f32 %v149, %v195
    %v246 = vadd.f32 %v150, %v202
    %v247 = vadd.f32 %v151, %v209
    %v248 = vadd.f32 %v152, %v216
    %v249 = vadd.f32 %v153, %v223
    %v250 = vadd.f32 %v154, %v230
    %v251 = vadd.f32 %v155, %v237
    %v252 = vadd.f32 %v156, %v244
    %v253 = vmul.f32 %v245, 8e-05
    %v254 = vmul.f32 %v246, 8e-05
    %v255 = vmul.f32 %v247, 8e-05
    %v256 = vmul.f32 %v248, 8e-05
    %v257 = vmul.f32 %v249, 8e-05
    %v258 = vmul.f32 %v250, 8e-05
    %v259 = vmul.f32 %v251, 8e-05
    %v260 = vmul.f32 %v252, 8e-05
    %v261 = vrcp.pop %v141
    %v262 = vrcp.pop %v142
    %v263 = vrcp.pop %v143
    %v264 = vrcp.pop %v144
    %v265 = vrcp.pop %v145
    %v266 = vrcp.pop %v146
    %v267 = vrcp.pop %v147
    %v268 = vmul.f32 %v12, %v261
    %v269 = vmul.f32 %v13, %v262
    %v270 = vmul.f32 %v14, %v263
    %v271 = vmul.f32 %v15, %v264
    %v272 = vmul.f32 %v16, %v265
    %v273 = vmul.f32 %v17, %v266
    %v274 = vmul.f32 %v18, %v267
    %v275 = vlaneseq
    %v276 = vshrl.u32 %v275, 7
    %v277 = vsub.s32 0, %v276
    %v278 = vrot.slane %v261, %v277
    %v279 = vlaneseq
    %v280 = vshrl.u32 %v279, 7
    %v281 = vsub.s32 0, %v280
    %v282 = vrot.slane %v262, %v281
    %v283 = vlaneseq
    %v284 = vshrl.u32 %v283, 7
    %v285 = vsub.s32 0, %v284
    %v286 = vrot.slane %v263, %v285
    %v287 = vlaneseq
    %v288 = vshrl.u32 %v287, 7
    %v289 = vsub.s32 0, %v288
    %v290 = vrot.slane %v264, %v289
    %v291 = vlaneseq
    %v292 = vshrl.u32 %v291, 7
    %v293 = vsub.s32 0, %v292
    %v294 = vrot.slane %v265, %v293
    %v295 = vlaneseq
    %v296 = vshrl.u32 %v295, 7
    %v297 = vsub.s32 0, %v296
    %v298 = vrot.slane %v266, %v297
    %v299 = vlaneseq
    %v300 = vshrl.u32 %v299, 7
    %v301 = vsub.s32 0, %v300
    %v302 = vrot.slane %v267, %v301
    %v303 = vmul.f32 %v52, %v278
    %v304 = vmul.f32 %v53, %v282
    %v305 = vmul.f32 %v54, %v286
    %v306 = vmul.f32 %v55, %v290
    %v307 = vmul.f32 %v56, %v294
    %v308 = vmul.f32 %v57, %v298
    %v309 = vmul.f32 %v58, %v302
    %v310 = vsub.f32 %v268, %v13
    %v311 = vsub.f32 %v269, %v14
    %v312 = vsub.f32 %v270, %v15
    %v313 = vsub.f32 %v271, %v16
    %v314 = vsub.f32 %v272, %v17
    %v315 = vsub.f32 %v273, %v18
    %v316 = vsub.f32 %v274, %v19
    %v317 = vand.u32 2147483647, %v310
    %v318 = vand.u32 2147483647, %v311
    %v319 = vand.u32 2147483647, %v312
    %v320 = vand.u32 2147483647, %v313
    %v321 = vand.u32 2147483647, %v314
    %v322 = vand.u32 2147483647, %v315
    %v323 = vand.u32 2147483647, %v316
    %v324 = vsub.f32 %v303, %v13
    %v325 = vsub.f32 %v304, %v14
    %v326 = vsub.f32 %v305, %v15
    %v327 = vsub.f32 %v306, %v16
    %v328 = vsub.f32 %v307, %v17
    %v329 = vsub.f32 %v308, %v18
    %v330 = vsub.f32 %v309, %v19
    %v331 = vand.u32 2147483647, %v324
    %v332 = vand.u32 2147483647, %v325
    %v333 = vand.u32 2147483647, %v326
    %v334 = vand.u32 2147483647, %v327
    %v335 = vand.u32 2147483647, %v328
    %v336 = vand.u32 2147483647, %v329
    %v337 = vand.u32 2147483647, %v330
    %v345 = vrot.slane %v331, 1
    %v346 = vrot.slane %v332, 1
    %v347 = vrot.slane %v333, 1
    %v348 = vrot.slane %v334, 1
    %v349 = vrot.slane %v335, 1
    %v350 = vrot.slane %v336, 1
    %v351 = vrot.slane %v337, 1
    %v359 = vsel %vm84, %v345, 0.0
    %v360 = vrot.slane %v359, 4
    %v361 = vadd.f32 %v359, %v360
    %v362 = vrot.slane %v361, 2
    %v363 = vadd.f32 %v361, %v362
    %v364 = vrot.slane %v363, 1
    %v365 = vadd.f32 %v363, %v364
    %v366 = vsel %vm84, %v346, 0.0
    %v367 = vrot.slane %v366, 4
    %v368 = vadd.f32 %v366, %v367
    %v369 = vrot.slane %v368, 2
    %v370 = vadd.f32 %v368, %v369
    %v371 = vrot.slane %v370, 1
    %v372 = vadd.f32 %v370, %v371
    %v373 = vsel %vm84, %v347, 0.0
    %v374 = vrot.slane %v373, 4
    %v375 = vadd.f32 %v373, %v374
    %v376 = vrot.slane %v375, 2
    %v377 = vadd.f32 %v375, %v376
    %v378 = vrot.slane %v377, 1
    %v379 = vadd.f32 %v377, %v378
    %v380 = vsel %vm84, %v348, 0.0
    %v381 = vrot.slane %v380, 4
    %v382 = vadd.f32 %v380, %v381
    %v383 = vrot.slane %v382, 2
    %v384 = vadd.f32 %v382, %v383
    %v385 = vrot.slane %v384, 1
    %v386 = vadd.f32 %v384, %v385
    %v387 = vsel %vm84, %v349, 0.0
    %v388 = vrot.slane %v387, 4
    %v389 = vadd.f32 %v387, %v388
    %v390 = vrot.slane %v389, 2
    %v391 = vadd.f32 %v389, %v390
    %v392 = vrot.slane %v391, 1
    %v393 = vadd.f32 %v391, %v392
    %v394 = vsel %vm84, %v350, 0.0
    %v395 = vrot.slane %v394, 4
    %v396 = vadd.f32 %v394, %v395
    %v397 = vrot.slane %v396, 2
    %v398 = vadd.f32 %v396, %v397
    %v399 = vrot.slane %v398, 1
    %v400 = vadd.f32 %v398, %v399
    %v401 = vsel %vm84, %v351, 0.0
    %v402 = vrot.slane %v401, 4
    %v403 = vadd.f32 %v401, %v402
    %v404 = vrot.slane %v403, 2
    %v405 = vadd.f32 %v403, %v404
    %v406 = vrot.slane %v405, 1
    %v407 = vadd.f32 %v405, %v406
    %v408 = vadd.f32 %v317, %v365
    %v409 = vadd.f32 %v318, %v372
    %v410 = vadd.f32 %v319, %v379
    %v411 = vadd.f32 %v320, %v386
    %v412 = vadd.f32 %v321, %v393
    %v413 = vadd.f32 %v322, %v400
    %v414 = vadd.f32 %v323, %v407
    %v415 = vmul.f32 %v408, 0.0025
    %v416 = vmul.f32 %v409, 0.0025
    %v417 = vmul.f32 %v410, 0.0025
    %v418 = vmul.f32 %v411, 0.0025
    %v419 = vmul.f32 %v412, 0.0025
    %v420 = vmul.f32 %v413, 0.0025
    %v421 = vmul.f32 %v414, 0.0025
    %v422 = vsub.f32 1.0, %v415
    %v423 = vsub.f32 1.0, %v416
    %v424 = vsub.f32 1.0, %v417
    %v425 = vsub.f32 1.0, %v418
    %v426 = vsub.f32 1.0, %v419
    %v427 = vsub.f32 1.0, %v420
    %v428 = vsub.f32 1.0, %v421
    %v429 = vmul.f32 %v142, %v422
    %v430 = vmul.f32 %v143, %v423
    %v431 = vmul.f32 %v144, %v424
    %v432 = vmul.f32 %v145, %v425
    %v433 = vmul.f32 %v146, %v426
    %v434 = vmul.f32 %v147, %v427
    %v435 = vmul.f32 %v148, %v428
    %v436 = vadd.f32 %v141, %v253
    %v437 = vadd.f32 %v429, %v254
    %v438 = vadd.f32 %v430, %v255
    %v439 = vadd.f32 %v431, %v256
    %v440 = vadd.f32 %v432, %v257
    %v441 = vadd.f32 %v433, %v258
    %v442 = vadd.f32 %v434, %v259
    %v443 = vadd.f32 %v435, %v260
    %v444 = vlog2.pop %v436
    %v445 = vmul.f32 %v444, 0.6931472
    %v446 = vlog2.pop %v437
    %v447 = vmul.f32 %v446, 0.6931472
    %v448 = vlog2.pop %v438
    %v449 = vmul.f32 %v448, 0.6931472
    %v450 = vlog2.pop %v439
    %v451 = vmul.f32 %v450, 0.6931472
    %v452 = vlog2.pop %v440
    %v453 = vmul.f32 %v452, 0.6931472
    %v454 = vlog2.pop %v441
    %v455 = vmul.f32 %v454, 0.6931472
    %v456 = vlog2.pop %v442
    %v457 = vmul.f32 %v456, 0.6931472
    %v458 = vlog2.pop %v443
    %v459 = vmul.f32 %v458, 0.6931472
    %vm460 = vcmask 8192
    %v461 = vsel %vm460, %v445, 0.0
    %v462 = vsel %vm460, %v447, 0.0
    %v463 = vadd.f32 %v461, %v462
    %v464 = vsel %vm460, %v449, 0.0
    %v465 = vadd.f32 %v463, %v464
    %v466 = vsel %vm460, %v451, 0.0
    %v467 = vadd.f32 %v465, %v466
    %v468 = vsel %vm460, %v453, 0.0
    %v469 = vadd.f32 %v467, %v468
    %v470 = vsel %vm460, %v455, 0.0
    %v471 = vadd.f32 %v469, %v470
    %v472 = vsel %vm460, %v457, 0.0
    %v473 = vadd.f32 %v471, %v472
    %v474 = vsel %vm460, %v459, 0.0
    %v475 = vadd.f32 %v473, %v474
    %476 = vst.msk [vmem:[#allocation2] sm:$0x1] %vm460, %v475
    // Predicated region
    $region10: #{tpu_custom_call.1} parent=1 // pred_check
      _
    $region11: #{tpu_custom_call.1} parent=1 // pred_check_branch
      %478 = sbr.rel (0) target = $region13
    $region12: #{tpu_custom_call.1} parent=1 // pred_region
      %s480 = ssub.s32 16, 16
      %481 = vsyncadd [#allocation3], %s480
      %s483 = sshll.u32 [#allocation2], 4
      %s484 = int_to_ptr.vmem [resolvable:$true] %s483
      %486 = dma.vmem_to_hbm [thread:$0]  %s484, 16, %s2, [#allocation3]
    $region13: #{tpu_custom_call.1} parent=1 // pred_fallthru
      _
    // Predicated region
    $region14: #{tpu_custom_call.1} parent=1 // pred_check
      _
    $region15: #{tpu_custom_call.1} parent=1 // pred_check_branch
      %488 = sbr.rel (0) target = $region17
    $region16: #{tpu_custom_call.1} parent=1 // pred_region
      %489 = dma.done [#allocation3], 16
    $region17: #{tpu_custom_call.1} parent=1 // pred_fallthru
      _
    %490 = vsyncpa [#allocation3], 1

</llo_original>
